<compile_context>
chip_gen: v7x
topology: tpu7x:2x2x1
jax: 0.10.0
libtpu: 0.0.40
codegen_flags: <defaults>
</compile_context>

<pallas_src>
import functools

import jax
import jax.numpy as jnp
from jax.experimental import pallas as pl
from jax.experimental.pallas import tpu as pltpu


def _round_up(n, m):
    return ((n + m - 1) // m) * m


def mapping_kernel(x_ref, w_ref, b_ref, out_ref, h_ref):
    """One (batch-tile, layer) grid step of the mapping MLP.

    x_ref   : (tm, D)    f32, zero-padded input tile (read only at layer 0)
    w_ref   : (1, D, D)  bf16, this layer's weight, (in x out), zero-padded
    b_ref   : (1, 1, D)  f32, this layer's bias, zero-padded
    out_ref : (tm, D)    f32, written only at the last layer
    h_ref   : (tm, D)    f32 VMEM scratch, activation carried across layers
    """
    l = pl.program_id(1)

    # L2-normalize over the feature axis at the first layer.  Zero padding
    # (extra lanes / extra batch rows) does not change the norm, matching
    # F.normalize(x, dim=1) with eps=1e-12.
    @pl.when(l == 0)
    def _():
        x = x_ref[...]
        sq = jnp.sum(x * x, axis=1, keepdims=True)
        inv = jax.lax.rsqrt(jnp.maximum(sq, 1e-24))   # == 1 / max(||x||, 1e-12)
        h_ref[...] = x * inv

    # Linear layer on the MXU: bf16 operands, f32 accumulation.
    z = jnp.dot(h_ref[...].astype(jnp.bfloat16), w_ref[0],
                preferred_element_type=jnp.float32)
    z = z + b_ref[0]                                  # f32 bias-add
    h = jnp.maximum(z, 0.2 * z)                       # LeakyReLU(0.2)
    h_ref[...] = h

    @pl.when(l == pl.num_programs(1) - 1)
    def _():
        out_ref[...] = h.astype(out_ref.dtype)


def pack_mapping_params(weights, biases, input_dim, *, lane=128):
    """Pack PyTorch-convention params once (hoisted out of the forward).

    weights[i]: (out, in) ;  biases[i]: (out,)
    Returns (w_stack bf16 (depth, D, D), b_stack f32 (depth, 1, D), D, emb_dim).
    Zero padding keeps the math exact: padded input rows of W are zero, padded
    output cols and biases are zero, and LeakyReLU(0) == 0, so padded features
    stay zero through all layers.
    """
    emb_dim = weights[0].shape[0]
    D = _round_up(max(emb_dim, input_dim), lane)

    w_stack = []
    for w in weights:
        wt = jnp.transpose(w).astype(jnp.float32)          # (in, out)
        wt = jnp.pad(wt, ((0, D - wt.shape[0]), (0, D - wt.shape[1])))
        w_stack.append(wt)
    w_stack = jnp.stack(w_stack).astype(jnp.bfloat16)      # (depth, D, D) bf16

    b_stack = jnp.stack([jnp.pad(b.astype(jnp.float32), (0, D - b.shape[0]))
                         for b in biases])[:, None, :]     # (depth, 1, D) f32
    return w_stack, b_stack, D, emb_dim


def mapping_network(x, w_stack, b_stack, emb_dim, *, sublane=8, max_tm=256):
    """x: (B, input_dim); w_stack/b_stack: pre-packed via pack_mapping_params."""
    B, input_dim = x.shape
    depth, D, _ = w_stack.shape

    # Batch tile: full batch if small, else 256-row tiles (fills the 256x256
    # MXU M dim on v6e/v7x at production sizes).
    Bp = _round_up(B, sublane)
    tm = Bp if Bp <= max_tm else max_tm
    Bp = _round_up(Bp, tm)
    nb = Bp // tm

    x_p = jnp.pad(x.astype(jnp.float32), ((0, Bp - B), (0, D - input_dim)))

    cost = pl.CostEstimate(
        flops=2 * Bp * D * D * depth,
        transcendentals=0,
        bytes_accessed=depth * D * D * 2 + depth * D * 4 + 2 * Bp * D * 4,
    )

    out = pl.pallas_call(
        mapping_kernel,
        out_shape=jax.ShapeDtypeStruct((Bp, D), jnp.float32),
        grid_spec=pltpu.PrefetchScalarGridSpec(
            num_scalar_prefetch=0,
            grid=(nb, depth),
            in_specs=[
                pl.BlockSpec((tm, D), lambda b, l: (b, 0)),      # input tile
                pl.BlockSpec((1, D, D), lambda b, l: (l, 0, 0)),  # layer weight
                pl.BlockSpec((1, 1, D), lambda b, l: (l, 0, 0)),  # layer bias
            ],
            out_specs=pl.BlockSpec((tm, D), lambda b, l: (b, 0)),
            scratch_shapes=[pltpu.VMEM((tm, D), jnp.float32)],    # activation carry
        ),
        compiler_params=pltpu.CompilerParams(
            dimension_semantics=("parallel", "arbitrary")),
        cost_estimate=cost,
    )(x_p, w_stack, b_stack)

    return out[:B, :emb_dim]


def mapping_network_ref(x, weights, biases):
    """Pure-JAX reference matching the PyTorch forward."""
    norm = jnp.maximum(jnp.sqrt(jnp.sum(x * x, axis=1, keepdims=True)), 1e-12)
    h = x / norm
    for w, b in zip(weights, biases):
        h = h @ w.T + b
        h = jnp.where(h >= 0.0, h, 0.2 * h)
    return h


if __name__ == "__main__":
    # Small shapes consistent with the module.
    B = 8
    INPUT_DIM = 16
    EMB_DIM = 32
    DEPTH = 8

    key = jax.random.PRNGKey(0)
    keys = jax.random.split(key, 2 * DEPTH + 1)
    x = jax.random.normal(keys[0], (B, INPUT_DIM), dtype=jnp.float32)

    # Deterministic synthetic parameters (PyTorch (out, in) convention).
    weights, biases = [], []
    in_dim = INPUT_DIM
    for li in range(DEPTH):
        w = jax.random.normal(keys[1 + 2 * li], (EMB_DIM, in_dim),
                              dtype=jnp.float32) * (1.0 / jnp.sqrt(in_dim))
        b = jax.random.normal(keys[2 + 2 * li], (EMB_DIM,),
                              dtype=jnp.float32) * 0.05
        weights.append(w)
        biases.append(b)
        in_dim = EMB_DIM

    # Pack parameters ONCE (hoisted out of the forward; reuse across calls).
    w_stack, b_stack, D, emb_dim = pack_mapping_params(weights, biases, INPUT_DIM)
    w_stack = jax.block_until_ready(w_stack)
    b_stack = jax.block_until_ready(b_stack)

    out = mapping_network(x, w_stack, b_stack, emb_dim)
    out = jax.block_until_ready(out)

    ref = mapping_network_ref(x, weights, biases)
    # bf16 matmul operands with f32 accumulation vs. default-precision f32 ref.
    if not jnp.allclose(out, ref, rtol=5e-2, atol=5e-3):
        raise AssertionError(
            f"mismatch: max abs diff = {float(jnp.max(jnp.abs(out - ref)))}")

    print("KERNEL_OK")
</pallas_src>

<mosaic_0001>
module attributes {stable_mosaic.version = 11 : i64} {
  func.func @mapping_kernel(%arg0: i32, %arg1: i32, %arg2: memref<8x128xf32, #tpu.memory_space<vmem>>, %arg3: memref<1x128x128xbf16, #tpu.memory_space<vmem>>, %arg4: memref<1x1x128xf32, #tpu.memory_space<vmem>>, %arg5: memref<8x128xf32, #tpu.memory_space<vmem>>, %arg6: memref<8x128xf32, #tpu.memory_space<vmem>>) attributes {dimension_semantics = [#tpu.dimension_semantics<parallel>, #tpu.dimension_semantics<arbitrary>], iteration_bounds = array<i64: 1, 8>, scalar_prefetch = 0 : i64, scratch_operands = 1 : i64, tpu.core_type = #tpu.core_type<tc>, window_params = [{transform_indices = @transform_0, window_bounds = array<i64: 8, 128>}, {transform_indices = @transform_1, window_bounds = array<i64: 1, 128, 128>}, {transform_indices = @transform_2, window_bounds = array<i64: 1, 1, 128>}, {transform_indices = @transform_3, window_bounds = array<i64: 8, 128>}]} {
    %c0_i32 = arith.constant 0 : i32
    %0 = arith.cmpi eq, %arg1, %c0_i32 : i32
    %1 = arith.extui %0 : i1 to i32
    %c0_i32_0 = arith.constant 0 : i32
    %2 = arith.cmpi ne, %1, %c0_i32_0 : i32
    scf.if %2 {
      %c0_12 = arith.constant 0 : index
      %c0_13 = arith.constant 0 : index
      %19 = vector.load %arg2[%c0_12, %c0_13] : memref<8x128xf32, #tpu.memory_space<vmem>>, vector<8x128xf32>
      %20 = arith.mulf %19, %19 : vector<8x128xf32>
      %cst_14 = arith.constant dense<0.000000e+00> : vector<8xf32>
      %21 = vector.multi_reduction <add>, %20, %cst_14 [1] : vector<8x128xf32> to vector<8xf32>
      %22 = vector.shape_cast %21 : vector<8xf32> to vector<8x1xf32>
      %cst_15 = arith.constant 1.000000e-24 : f32
      %23 = vector.broadcast %cst_15 : f32 to vector<8x1xf32>
      %24 = arith.maximumf %22, %23 : vector<8x1xf32>
      %25 = math.rsqrt %24 : vector<8x1xf32>
      %26 = vector.broadcast %25 : vector<8x1xf32> to vector<8x128xf32>
      %27 = arith.mulf %19, %26 : vector<8x128xf32>
      %c0_16 = arith.constant 0 : index
      %c0_17 = arith.constant 0 : index
      %28 = vector.load %arg6[%c0_16, %c0_17] : memref<8x128xf32, #tpu.memory_space<vmem>>, vector<8x128xf32>
      tpu.vector_store %arg6[%c0_16, %c0_17], %27 {strides = array<i32>} : memref<8x128xf32, #tpu.memory_space<vmem>>, vector<8x128xf32>,
    } else {
    }
    %c0 = arith.constant 0 : index
    %c0_1 = arith.constant 0 : index
    %3 = vector.load %arg6[%c0, %c0_1] : memref<8x128xf32, #tpu.memory_space<vmem>>, vector<8x128xf32>
    %4 = arith.truncf %3 : vector<8x128xf32> to vector<8x128xbf16>
    %c0_2 = arith.constant 0 : index
    %c0_3 = arith.constant 0 : index
    %c0_4 = arith.constant 0 : index
    %5 = vector.load %arg3[%c0_2, %c0_3, %c0_4] : memref<1x128x128xbf16, #tpu.memory_space<vmem>>, vector<1x128x128xbf16>
    %6 = vector.shape_cast %5 : vector<1x128x128xbf16> to vector<128x128xbf16>
    %cst = arith.constant dense<0.000000e+00> : vector<8x128xf32>
    %7 = tpu.matmul %4, %6, %cst {dimension_numbers = #tpu.dot_dimension_numbers<[1], [0], [0], [1], [0, 0, 1, 1], [], []>} : vector<8x128xbf16>, vector<128x128xbf16>, vector<8x128xf32> -> vector<8x128xf32>
    %c0_5 = arith.constant 0 : index
    %c0_6 = arith.constant 0 : index
    %c0_7 = arith.constant 0 : index
    %8 = vector.load %arg4[%c0_5, %c0_6, %c0_7] : memref<1x1x128xf32, #tpu.memory_space<vmem>>, vector<1x1x128xf32>
    %9 = vector.shape_cast %8 : vector<1x1x128xf32> to vector<1x128xf32>
    %10 = vector.broadcast %9 : vector<1x128xf32> to vector<8x128xf32>
    %11 = arith.addf %7, %10 : vector<8x128xf32>
    %cst_8 = arith.constant 2.000000e-01 : f32
    %12 = vector.broadcast %cst_8 : f32 to vector<8x128xf32>
    %13 = arith.mulf %12, %11 : vector<8x128xf32>
    %14 = arith.maximumf %11, %13 : vector<8x128xf32>
    %c0_9 = arith.constant 0 : index
    %c0_10 = arith.constant 0 : index
    %15 = vector.load %arg6[%c0_9, %c0_10] : memref<8x128xf32, #tpu.memory_space<vmem>>, vector<8x128xf32>
    tpu.vector_store %arg6[%c0_9, %c0_10], %14 {strides = array<i32>} : memref<8x128xf32, #tpu.memory_space<vmem>>, vector<8x128xf32>,
    %c7_i32 = arith.constant 7 : i32
    %16 = arith.cmpi eq, %arg1, %c7_i32 : i32
    %17 = arith.extui %16 : i1 to i32
    %c0_i32_11 = arith.constant 0 : i32
    %18 = arith.cmpi ne, %17, %c0_i32_11 : i32
    scf.if %18 {
      %c0_12 = arith.constant 0 : index
      %c0_13 = arith.constant 0 : index
      %19 = vector.load %arg5[%c0_12, %c0_13] : memref<8x128xf32, #tpu.memory_space<vmem>>, vector<8x128xf32>
      tpu.vector_store %arg5[%c0_12, %c0_13], %14 {strides = array<i32>} : memref<8x128xf32, #tpu.memory_space<vmem>>, vector<8x128xf32>,
    } else {
    }
    return
  }
  func.func @transform_0(%arg0: i32, %arg1: i32) -> (i32, i32) {
    %c0_i32 = arith.constant 0 : i32
    %c0_i32_0 = arith.constant 0 : i32
    return %arg0, %c0_i32 : i32, i32
  }
  func.func @transform_1(%arg0: i32, %arg1: i32) -> (i32, i32, i32) {
    %c0_i32 = arith.constant 0 : i32
    %c0_i32_0 = arith.constant 0 : i32
    %c0_i32_1 = arith.constant 0 : i32
    return %arg1, %c0_i32, %c0_i32_0 : i32, i32, i32
  }
  func.func @transform_2(%arg0: i32, %arg1: i32) -> (i32, i32, i32) {
    %c0_i32 = arith.constant 0 : i32
    %c0_i32_0 = arith.constant 0 : i32
    %c0_i32_1 = arith.constant 0 : i32
    return %arg1, %c0_i32, %c0_i32_0 : i32, i32, i32
  }
  func.func @transform_3(%arg0: i32, %arg1: i32) -> (i32, i32) {
    %c0_i32 = arith.constant 0 : i32
    %c0_i32_0 = arith.constant 0 : i32
    return %arg0, %c0_i32 : i32, i32
  }
}

</mosaic_0001>

<llo_original>
// kernel: tpu_custom_call.1
$region0: #{tpu_custom_call.1}
  #allocation0 [shape = 'u32[]', space=smem, size = 0x4, offset = 0x4, fixed_abs, tag = 'smem constant byte address 0x4 - core index']
  #allocation1 [shape = 'u32[144,128]{1,0:T(1,128)}', space=vmem, size = 0x12000, scoped, tag = 'internal scratch']
  #allocation2 [shape = 'f32[8,128]{1,0:T(8,128)}', space=vmem, size = 0x1000, scoped, tag = 'scratch operand']
  %s0 = inlined_call_operand.hbm [shape: f32[8,128], index: 0, kind: input, shape index: {}]
  %s1 = inlined_call_operand.hbm [shape: bf16[8,128,128], index: 1, kind: input, shape index: {}]
  %s2 = inlined_call_operand.hbm [shape: f32[8,1,128], index: 2, kind: input, shape index: {}]
  %s3 = inlined_call_operand.hbm [shape: f32[8,128], index: 3, kind: output, shape index: {}]
  %s4 = sld [smem:[#allocation0]]
  $region65: #{tpu_custom_call.1} parent=0
    _
  %s6 = ssub.s32 1, %s4
  %s7 = scalar_select 0, %s6, %s4
  $region1: #{tpu_custom_call.1} parent=0
    #allocation3 [shape = 'u8[4096]{0}', space=vmem, size = 0x1000, scoped, tag = 'input window, operand 0, single buffered']
    #allocation4 [shape = 's32[2]{0}', space=sflag, size = 0x8, scoped, tag = 'scoped memory for tpu_custom_call.1']
    #allocation5 [shape = 's32[2]{0}', space=sflag, size = 0x8, scoped, tag = 'scoped memory for tpu_custom_call.1']
    #allocation6 [shape = 'u8[65536]{0}', space=vmem, size = 0x10000, scoped, tag = 'input window, operand 1']
    #allocation7 [shape = 's32[2]{0}', space=sflag, size = 0x8, scoped, tag = 'scoped memory for tpu_custom_call.1']
    #allocation8 [shape = 'u8[1024]{0}', space=vmem, size = 0x400, scoped, tag = 'input window, operand 2']
    #allocation9 [shape = 'u8[4096]{0}', space=vmem, size = 0x1000, scoped, tag = 'output window, operand 0, single buffered']
    %8 = vsyncpa [#allocation4], 0
    %9 = vsyncpa [#allocation7], 0
    %s10 = scalar_lea.sflag [#allocation7], 1
    %11 = vsyncpa %s10, 0
    %12 = vsyncpa [#allocation5], 0
    loop: start=0, step=1, limit=10
    $region2: #{tpu_custom_call.1} parent=1 // loop_pre_header
      _
    $region3: #{tpu_custom_call.1} parent=1 // loop_header
      %s14 = sphi 0, %s18
      %p15 = scmp.ge.s32.totalorder %s14, 10
      %s21 = sphi 0, %s33
      %s22 = sphi 0, %s29
      %s23 = sphi 0, %s21
      %s24 = sphi 0, %s22
      %s25 = sphi 0, %s23
      %s26 = sphi 0, %s24
      %s36 = sphi 0, %s38
      %s39 = sphi 0, %s36
      %s40 = sphi 0, %s39
      %s56 = sphi 0, %s40
      %s62 = sphi 0, %s64
      %s65 = sphi 0, %s62
      %s66 = sphi 0, %s65
      %s82 = sphi 0, %s66
      %s88 = sphi 0, %s90
      %s91 = sphi 0, %s88
      %s92 = sphi 0, %s91
      %s108 = sphi 0, %s92
      %s114 = sphi 0, %s116
      %s117 = sphi 0, %s114
      %s118 = sphi 0, %s117
      %s134 = sphi 0, %s118
    $region4: #{tpu_custom_call.1} parent=1 // loop_header_branch
      %17 = sbr.rel (%p15) target = $region8
    $region5: #{tpu_custom_call.1} parent=1 // loop_body
      %s19 = ssub.s32 %s14, 1
      %s20 = ssub.s32 %s14, 2
      %s27 = sadd.s32 1, %s22
      %p28 = scmp.ge.s32.totalorder %s27, 8
      %s29 = scalar_select %p28, 0, %s27
      %s30 = sadd.s32 1, %s21
      %s31 = scalar_select %p28, %s30, %s21
      %p32 = scmp.ge.s32.totalorder %s31, 1
      %s33 = scalar_select %p32, 0, %s31
      %s34 = ssub.s32 %s21, %s33
      %p35 = scmp.eq.s32.totalorder %s34, 0
      %s37 = sadd.s32 %s36, 1
      %s38 = scalar_select %p35, %s36, %s37
      %p41 = pneg %p35
      %p42 = scmp.eq.s32.totalorder %s14, 7
      %p43 = por %p41, %p42
      %p44 = scmp.ne.s32.totalorder %s36, %s39
      %p45 = scmp.eq.s32.totalorder %s14, 0
      %p46 = por %p44, %p45
      %p47 = scmp.ne.s32.totalorder %s36, %s39
      %p48 = scmp.eq.s32.totalorder %s19, 7
      %p49 = por %p47, %p48
      %p50 = scmp.ne.s32.totalorder %s39, %s40
      %p51 = scmp.eq.s32.totalorder %s19, 0
      %p52 = por %p50, %p51
      %p53 = scmp.ne.s32.totalorder %s39, %s40
      %p54 = scmp.eq.s32.totalorder %s20, 7
      %p55 = por %p53, %p54
      %p57 = scmp.ne.s32.totalorder %s40, %s56
      %p58 = scmp.eq.s32.totalorder %s20, 0
      %p59 = por %p57, %p58
      %s60 = ssub.s32 %s22, %s29
      %p61 = scmp.eq.s32.totalorder %s60, 0
      %s63 = sadd.s32 %s62, 1
      %s64 = scalar_select %p61, %s62, %s63
      %p67 = pneg %p61
      %p68 = scmp.eq.s32.totalorder %s14, 7
      %p69 = por %p67, %p68
      %p70 = scmp.ne.s32.totalorder %s62, %s65
      %p71 = scmp.eq.s32.totalorder %s14, 0
      %p72 = por %p70, %p71
      %p73 = scmp.ne.s32.totalorder %s62, %s65
      %p74 = scmp.eq.s32.totalorder %s19, 7
      %p75 = por %p73, %p74
      %p76 = scmp.ne.s32.totalorder %s65, %s66
      %p77 = scmp.eq.s32.totalorder %s19, 0
      %p78 = por %p76, %p77
      %p79 = scmp.ne.s32.totalorder %s65, %s66
      %p80 = scmp.eq.s32.totalorder %s20, 7
      %p81 = por %p79, %p80
      %p83 = scmp.ne.s32.totalorder %s66, %s82
      %p84 = scmp.eq.s32.totalorder %s20, 0
      %p85 = por %p83, %p84
      %s86 = ssub.s32 %s22, %s29
      %p87 = scmp.eq.s32.totalorder %s86, 0
      %s89 = sadd.s32 %s88, 1
      %s90 = scalar_select %p87, %s88, %s89
      %p93 = pneg %p87
      %p94 = scmp.eq.s32.totalorder %s14, 7
      %p95 = por %p93, %p94
      %p96 = scmp.ne.s32.totalorder %s88, %s91
      %p97 = scmp.eq.s32.totalorder %s14, 0
      %p98 = por %p96, %p97
      %p99 = scmp.ne.s32.totalorder %s88, %s91
      %p100 = scmp.eq.s32.totalorder %s19, 7
      %p101 = por %p99, %p100
      %p102 = scmp.ne.s32.totalorder %s91, %s92
      %p103 = scmp.eq.s32.totalorder %s19, 0
      %p104 = por %p102, %p103
      %p105 = scmp.ne.s32.totalorder %s91, %s92
      %p106 = scmp.eq.s32.totalorder %s20, 7
      %p107 = por %p105, %p106
      %p109 = scmp.ne.s32.totalorder %s92, %s108
      %p110 = scmp.eq.s32.totalorder %s20, 0
      %p111 = por %p109, %p110
      %s112 = ssub.s32 %s21, %s33
      %p113 = scmp.eq.s32.totalorder %s112, 0
      %s115 = sadd.s32 %s114, 1
      %s116 = scalar_select %p113, %s114, %s115
      %p119 = pneg %p113
      %p120 = scmp.eq.s32.totalorder %s14, 7
      %p121 = por %p119, %p120
      %p122 = scmp.ne.s32.totalorder %s114, %s117
      %p123 = scmp.eq.s32.totalorder %s14, 0
      %p124 = por %p122, %p123
      %p125 = scmp.ne.s32.totalorder %s114, %s117
      %p126 = scmp.eq.s32.totalorder %s19, 7
      %p127 = por %p125, %p126
      %p128 = scmp.ne.s32.totalorder %s117, %s118
      %p129 = scmp.eq.s32.totalorder %s19, 0
      %p130 = por %p128, %p129
      %p131 = scmp.ne.s32.totalorder %s117, %s118
      %p132 = scmp.eq.s32.totalorder %s20, 7
      %p133 = por %p131, %p132
      %p135 = scmp.ne.s32.totalorder %s118, %s134
      %p136 = scmp.eq.s32.totalorder %s20, 0
      %p137 = por %p135, %p136
      %p138 = scmp.le.s32.totalorder 1, %s14
      %p139 = scmp.lt.s32.totalorder %s14, 9
      %p140 = pnand %p138, %p139
      %p141 = pneg %p140
      // Predicated region
      $region9: #{tpu_custom_call.1} parent=5 // pred_check
        _
      $region10: #{tpu_custom_call.1} parent=5 // pred_check_branch
        %143 = sbr.rel (%p140) target = $region12
      $region11: #{tpu_custom_call.1} parent=5 // pred_region
        %s144 = ssub.s32 %s14, 1
        // Predicated region
        $region13: #{tpu_custom_call.1} parent=11 // pred_check
          %p145 = pneg %p52
        $region14: #{tpu_custom_call.1} parent=11 // pred_check_branch
          %147 = sbr.rel (%p145) target = $region16
        $region15: #{tpu_custom_call.1} parent=11 // pred_region
          %s149 = ssub.s32 128, 128
          %150 = vsyncadd [#allocation4], %s149
          %s151 = smul.addr %s23, 128
          %s152 = scalar_lea.hbm %s0, %s151
          %s154 = sshll.u32 [#allocation3], 4
          %s155 = int_to_ptr.vmem [resolvable:$true] %s154
          %157 = dma.hbm_to_vmem [thread:$0]  %s152, 128, %s155, [#allocation4]
        $region16: #{tpu_custom_call.1} parent=11 // pred_fallthru
          _
      $region12: #{tpu_custom_call.1} parent=5 // pred_fallthru
        _
      %p158 = scmp.lt.s32.totalorder %s14, 8
      // Predicated region
      $region17: #{tpu_custom_call.1} parent=5 // pred_check
        %p159 = pneg %p158
      $region18: #{tpu_custom_call.1} parent=5 // pred_check_branch
        %161 = sbr.rel (%p159) target = $region20
      $region19: #{tpu_custom_call.1} parent=5 // pred_region
        // Predicated region
        $region21: #{tpu_custom_call.1} parent=19 // pred_check
          %p162 = pneg %p72
        $region22: #{tpu_custom_call.1} parent=19 // pred_check_branch
          %164 = sbr.rel (%p162) target = $region24
        $region23: #{tpu_custom_call.1} parent=19 // pred_region
          %s165 = sand.u32 %s14, 1
          %s166 = scalar_lea.sflag [#allocation7], %s165
          %s167 = sand.u32 %s62, 1
          %s168 = smul.addr %s167, 64
          %s169 = scalar_lea.vmem [#allocation6], %s168
          %s171 = ssub.s32 1024, 1024
          %172 = vsyncadd %s166, %s171
          %s173 = smul.addr %s22, 16
          %s174 = smul.addr %s173, 64
          %s175 = scalar_lea.hbm %s1, %s174
          %s176 = sshll.u32 %s169, 4
          %s177 = int_to_ptr.vmem [resolvable:$true] %s176
          %182 = dma.hbm_to_vmem [thread:$0]  %s175, 1024, %s177, %s166, 64, 64, 4
        $region24: #{tpu_custom_call.1} parent=19 // pred_fallthru
          _
        // Predicated region
        $region25: #{tpu_custom_call.1} parent=19 // pred_check
          %p183 = pneg %p98
        $region26: #{tpu_custom_call.1} parent=19 // pred_check_branch
          %185 = sbr.rel (%p183) target = $region28
        $region27: #{tpu_custom_call.1} parent=19 // pred_region
          %s186 = sand.u32 %s14, 1
          %s187 = scalar_lea.sflag [#allocation7], %s186
          %s188 = sand.u32 %s88, 1
          %s189 = scalar_lea.vmem [#allocation8], %s188
          %s191 = ssub.s32 16, 16
          %192 = vsyncadd %s187, %s191
          %s193 = smul.addr %s22, 16
          %s194 = scalar_lea.hbm %s2, %s193
          %s196 = sshll.u32 %s189, 4
          %s197 = int_to_ptr.vmem [resolvable:$true] %s196
          %199 = dma.hbm_to_vmem [thread:$0]  %s194, 16, %s197, %s187
        $region28: #{tpu_custom_call.1} parent=19 // pred_fallthru
          _
      $region20: #{tpu_custom_call.1} parent=5 // pred_fallthru
        _
      %p200 = scmp.le.s32.totalorder 1, %s14
      %p201 = scmp.lt.s32.totalorder %s14, 9
      %p202 = pnand %p200, %p201
      %p203 = pneg %p202
      // Predicated region
      $region29: #{tpu_custom_call.1} parent=5 // pred_check
        _
      $region30: #{tpu_custom_call.1} parent=5 // pred_check_branch
        %205 = sbr.rel (%p202) target = $region32
      $region31: #{tpu_custom_call.1} parent=5 // pred_region
        %s206 = ssub.s32 %s14, 1
        // Predicated region
        $region33: #{tpu_custom_call.1} parent=31 // pred_check
          %p207 = pneg %p52
        $region34: #{tpu_custom_call.1} parent=31 // pred_check_branch
          %209 = sbr.rel (%p207) target = $region36
        $region35: #{tpu_custom_call.1} parent=31 // pred_region
          %210 = dma.done [#allocation4], 128
        $region36: #{tpu_custom_call.1} parent=31 // pred_fallthru
          _
        %s211 = sand.u32 %s19, 1
        %s212 = scalar_lea.sflag [#allocation7], %s211
        %s213 = sand.u32 %s65, 1
        %s214 = smul.addr %s213, 64
        %s215 = scalar_lea.vmem [#allocation6], %s214
        // Predicated region
        $region37: #{tpu_custom_call.1} parent=31 // pred_check
          %p216 = pneg %p78
        $region38: #{tpu_custom_call.1} parent=31 // pred_check_branch
          %218 = sbr.rel (%p216) target = $region40
        $region39: #{tpu_custom_call.1} parent=31 // pred_region
          %219 = dma.done %s212, 1024
        $region40: #{tpu_custom_call.1} parent=31 // pred_fallthru
          _
        %s220 = sand.u32 %s19, 1
        %s221 = scalar_lea.sflag [#allocation7], %s220
        %s222 = sand.u32 %s91, 1
        %s223 = scalar_lea.vmem [#allocation8], %s222
        // Predicated region
        $region41: #{tpu_custom_call.1} parent=31 // pred_check
          %p224 = pneg %p104
        $region42: #{tpu_custom_call.1} parent=31 // pred_check_branch
          %226 = sbr.rel (%p224) target = $region44
        $region43: #{tpu_custom_call.1} parent=31 // pred_region
          %227 = dma.done %s221, 16
        $region44: #{tpu_custom_call.1} parent=31 // pred_fallthru
          _
        %p228 = pneg %p52
        %p229 = pneg %p49
        %s230 = sand.u32 %s19, 1
        %s231 = scalar_lea.sflag [#allocation7], %s230
        %s232 = sand.u32 %s65, 1
        %s233 = smul.addr %s232, 64
        %s234 = scalar_lea.vmem [#allocation6], %s233
        %p235 = pneg %p78
        %p236 = pneg %p75
        %s237 = sand.u32 %s19, 1
        %s238 = scalar_lea.sflag [#allocation7], %s237
        %s239 = sand.u32 %s91, 1
        %s240 = scalar_lea.vmem [#allocation8], %s239
        %p241 = pneg %p104
        %p242 = pneg %p101
        %p243 = pneg %p130
        %p244 = pneg %p127
        %p246 = scmp.eq.s32.totalorder %s24, 0
        // Predicated region
        $region45: #{tpu_custom_call.1} parent=31 // pred_check
          %p247 = pneg %p246
        $region46: #{tpu_custom_call.1} parent=31 // pred_check_branch
          %249 = sbr.rel (%p247) target = $region48
        $region47: #{tpu_custom_call.1} parent=31 // pred_region
          %v250 = vld [vmem:[#allocation3] sm:$0xff]
          %v251 = vmul.f32 %v250, %v250
          %252 = vadd.xlane.f32.xlu0 %v251
          %v253 = vpop.xlane.xlu0 %252
          %v254 = vmax.f32 %v253, 1e-24
          %v255 = vrsqrt.pop %v254
          %v256 = vmul.f32 %v250, %v255
          %257 = vst [vmem:[#allocation2] sm:$0xff] %v256
        $region48: #{tpu_custom_call.1} parent=31 // pred_fallthru
          _
        %v258 = vld [vmem:[#allocation2] sm:$0xff]
        %v259 = vpack.c.bf16 %v258, %v258
        %v260 = vld [vmem:[%s215] sm:$0xf]
        %v261 = vld [vmem:[%s215 + $0x4] sm:$0xf]
        %v262 = vld [vmem:[%s215 + $0x8] sm:$0xf]
        %v263 = vld [vmem:[%s215 + $0xc] sm:$0xf]
        %v264 = vld [vmem:[%s215 + $0x10] sm:$0xf]
        %v265 = vld [vmem:[%s215 + $0x14] sm:$0xf]
        %v266 = vld [vmem:[%s215 + $0x18] sm:$0xf]
        %v267 = vld [vmem:[%s215 + $0x1c] sm:$0xf]
        %v268 = vld [vmem:[%s215 + $0x20] sm:$0xf]
        %v269 = vld [vmem:[%s215 + $0x24] sm:$0xf]
        %v270 = vld [vmem:[%s215 + $0x28] sm:$0xf]
        %v271 = vld [vmem:[%s215 + $0x2c] sm:$0xf]
        %v272 = vld [vmem:[%s215 + $0x30] sm:$0xf]
        %v273 = vld [vmem:[%s215 + $0x34] sm:$0xf]
        %v274 = vld [vmem:[%s215 + $0x38] sm:$0xf]
        %v275 = vld [vmem:[%s215 + $0x3c] sm:$0xf]
        %v276 = vld [vmem:[%s223] sm:$0x1]
        %v278 = vlaneseq
        %v279 = vshrl.u32 %v278, 7
        %v280 = vsub.s32 0, %v279
        %v281 = vrot.slane %v276, %v280
        %v299 = vunpack.c.l.b16 %v260
        %v300 = vunpack.c.l.b16 %v261
        %v301 = vunpack.c.l.b16 %v262
        %v302 = vunpack.c.l.b16 %v263
        %v303 = vunpack.c.l.b16 %v264
        %v304 = vunpack.c.l.b16 %v265
        %v305 = vunpack.c.l.b16 %v266
        %v306 = vunpack.c.l.b16 %v267
        %v307 = vunpack.c.l.b16 %v268
        %v308 = vunpack.c.l.b16 %v269
        %v309 = vunpack.c.l.b16 %v270
        %v310 = vunpack.c.l.b16 %v271
        %v311 = vunpack.c.l.b16 %v272
        %v312 = vunpack.c.l.b16 %v273
        %v313 = vunpack.c.l.b16 %v274
        %v314 = vunpack.c.l.b16 %v275
        %v315 = vpack.c.b16 %v300, %v299
        %v316 = vpack.c.b16 %v302, %v301
        %v317 = vpack.c.b16 %v304, %v303
        %v318 = vpack.c.b16 %v306, %v305
        %v319 = vpack.c.b16 %v308, %v307
        %v320 = vpack.c.b16 %v310, %v309
        %v321 = vpack.c.b16 %v312, %v311
        %v322 = vpack.c.b16 %v314, %v313
        %331 = vmatprep.subr.bf16.mxu0 0
        %332 = vmatpush1.bf16.msra.mxu0 %v315
        %333 = vmatprep.subr.bf16.mxu0 0
        %334 = vmatpush1.bf16.msra.mxu0 %v316
        %335 = vmatprep.subr.bf16.mxu0 0
        %336 = vmatpush1.bf16.msra.mxu0 %v317
        %337 = vmatprep.subr.bf16.mxu0 0
        %338 = vmatpush1.bf16.msra.mxu0 %v318
        %339 = vmatprep.subr.bf16.mxu0 0
        %340 = vmatpush1.bf16.msra.mxu0 %v319
        %341 = vmatprep.subr.bf16.mxu0 0
        %342 = vmatpush1.bf16.msra.mxu0 %v320
        %343 = vmatprep.subr.bf16.mxu0 0
        %344 = vmatpush1.bf16.msra.mxu0 %v321
        %345 = vmatprep.subr.bf16.mxu0 0
        %346 = vmatpush1.bf16.msra.mxu0 %v322
        %347 = vmatprep.subr.bf16.mxu0 0
        %348 = vmatpush1.bf16.msra.mxu0 0
        %349 = vmatprep.subr.bf16.mxu0 0
        %350 = vmatpush1.bf16.msra.mxu0 0
        %351 = vmatprep.subr.bf16.mxu0 0
        %352 = vmatpush1.bf16.msra.mxu0 0
        %353 = vmatprep.subr.bf16.mxu0 0
        %354 = vmatpush1.bf16.msra.mxu0 0
        %355 = vmatprep.subr.bf16.mxu0 0
        %356 = vmatpush1.bf16.msra.mxu0 0
        %357 = vmatprep.subr.bf16.mxu0 0
        %358 = vmatpush1.bf16.msra.mxu0 0
        %359 = vmatprep.subr.bf16.mxu0 0
        %360 = vmatpush1.bf16.msra.mxu0 0
        %361 = vmatprep.subr.bf16.mxu0 0
        %362 = vmatpush1.bf16.msra.mxu0 0
        %363 = vmatprep.mubr.bf16.mxu0 0
        %364 = vmatmul.mubr.bf16.gmra.mrb[0].mxu0 %v259
        %v365 = vpop.f32.mrb[0].mxu0
        %v366 = vadd.f32 %v281, %v365
        %v367 = vpop.f32.mrb[0].mxu0
        %v368 = vpop.f32.mrb[0].mxu0
        %v369 = vpop.f32.mrb[0].mxu0
        %370 = vdwg.mxu0
        %v371 = vmul.f32 %v366, 0.2
        %v372 = vmax.f32 %v366, %v371
        %373 = vst [vmem:[#allocation2] sm:$0xff] %v372
        %p374 = scmp.eq.s32.totalorder %s24, 7
        // Predicated region
        $region49: #{tpu_custom_call.1} parent=31 // pred_check
          %p375 = pneg %p374
        $region50: #{tpu_custom_call.1} parent=31 // pred_check_branch
          %377 = sbr.rel (%p375) target = $region52
        $region51: #{tpu_custom_call.1} parent=31 // pred_region
          %378 = vst [vmem:[#allocation9] sm:$0xff] %v372
        $region52: #{tpu_custom_call.1} parent=31 // pred_fallthru
          _
        // Predicated region
        $region53: #{tpu_custom_call.1} parent=31 // pred_check
          %p379 = pneg %p127
        $region54: #{tpu_custom_call.1} parent=31 // pred_check_branch
          %381 = sbr.rel (%p379) target = $region56
        $region55: #{tpu_custom_call.1} parent=31 // pred_region
          %s383 = ssub.s32 128, 128
          %384 = vsyncadd [#allocation5], %s383
          %s385 = smul.addr %s23, 128
          %s386 = scalar_lea.hbm %s3, %s385
          %s388 = sshll.u32 [#allocation9], 4
          %s389 = int_to_ptr.vmem [resolvable:$true] %s388
          %391 = dma.vmem_to_hbm [thread:$0]  %s389, 128, %s386, [#allocation5]
        $region56: #{tpu_custom_call.1} parent=31 // pred_fallthru
          _
        // Predicated region
        $region57: #{tpu_custom_call.1} parent=31 // pred_check
          %p392 = pneg %p127
        $region58: #{tpu_custom_call.1} parent=31 // pred_check_branch
          %394 = sbr.rel (%p392) target = $region60
        $region59: #{tpu_custom_call.1} parent=31 // pred_region
          %395 = dma.done [#allocation5], 128
        $region60: #{tpu_custom_call.1} parent=31 // pred_fallthru
          _
      $region32: #{tpu_custom_call.1} parent=5 // pred_fallthru
        _
      %p396 = scmp.le.s32.totalorder 2, %s14
      // Predicated region
      $region61: #{tpu_custom_call.1} parent=5 // pred_check
        %p397 = pneg %p396
      $region62: #{tpu_custom_call.1} parent=5 // pred_check_branch
        %399 = sbr.rel (%p397) target = $region64
      $region63: #{tpu_custom_call.1} parent=5 // pred_region
        %s400 = ssub.s32 %s14, 2
      $region64: #{tpu_custom_call.1} parent=5 // pred_fallthru
        _
    $region6: #{tpu_custom_call.1} parent=1 // loop_footer
      %s18 = sadd.s32 1, %s14
    $region7: #{tpu_custom_call.1} parent=1 // loop_footer_branch
      %13 = sbr.rel target = $region3
    $region8: #{tpu_custom_call.1} parent=1 // loop_exit
      _
    %401 = vsyncpa [#allocation4], 1
    %s402 = scalar_lea.sflag [#allocation4], 1
    %403 = vsyncpa %s402, 1
    %404 = vsyncpa [#allocation7], 1
    %s405 = scalar_lea.sflag [#allocation7], 1
    %406 = vsyncpa %s405, 1
    %407 = vsyncpa [#allocation5], 1
    %s408 = scalar_lea.sflag [#allocation5], 1
    %409 = vsyncpa %s408, 1

</llo_original>
